<compile_context>
chip_gen: v7x
topology: tpu7x:2x2x1
jax: 0.10.0
libtpu: 0.0.40
codegen_flags: <defaults>
</compile_context>

<pallas_src>
import jax
import jax.numpy as jnp
from jax.experimental import pallas as pl
from jax.experimental.pallas import tpu as pltpu


def local_model_kernel(obs_ref, w1_ref, b1_ref, loc_ref, wc_ref, w2l_ref,
                       bslab_ref, packed_ref, acc_ref):
    """grid = (batch blocks, K blocks). K (reduction) axis is last/'arbitrary'."""
    k = pl.program_id(1)

    @pl.when(k == 0)
    def _():
        acc_ref[...] = jnp.zeros_like(acc_ref)

    # ---- feature extractor partial sum: acc += obs_k @ W1_k ----
    # obs arrives f32 (no wrapper cast); VPU cast to bf16 is free under DMA
    # slack, MXU accumulates in f32.
    acc_ref[...] += jnp.dot(obs_ref[...].astype(jnp.bfloat16), w1_ref[...],
                            preferred_element_type=jnp.float32)

    @pl.when(k == pl.num_programs(1) - 1)
    def _():
        # ft = relu(acc + b1)
        ft = jnp.maximum(acc_ref[...] + b1_ref[...], 0.0)

        # Identity-augmented classifier: one MXU push yields the lane-dense
        # packed slab [ft | ft @ W2_ft | 0] of width 128.
        packed = jnp.dot(ft.astype(jnp.bfloat16), wc_ref[...],
                         preferred_element_type=jnp.float32)

        # loc @ W2_loc on the VPU: L and A are tiny (2x2); a second MXU push
        # for 8 MACs is wasted. Static unroll over L (trace-time constant).
        loc = loc_ref[...]
        w2l = w2l_ref[...]
        for l in range(loc.shape[1]):
            packed = packed + loc[:, l:l + 1] * w2l[l:l + 1, :]

        packed_ref[...] = packed + bslab_ref[...]


def _choose_tb(batch):
    """Batch tile: multiple of 16 minimizing padding; >= 2 blocks when
    batch >= 16 so the 'parallel' batch axis can shard across v7x's 2 TCs."""
    if batch <= 16:
        return batch                                    # one full-batch block
    cap = min(256, (((batch + 1) // 2) + 15) // 16 * 16)  # round_up(ceil(B/2),16)
    best_tb, best_pad = 16, (-batch) % 16
    for tb in range(16, cap + 1, 16):
        pad = (-batch) % tb
        if pad <= best_pad:                             # ties -> larger tile
            best_tb, best_pad = tb, pad
    return best_tb


def _choose_tk(d):
    """K (reduction) tile over the flattened-observation dim."""
    if d <= 4096:
        return d                                        # single K block
    for tk in (2048, 1024, 512, 256, 128):
        if d % tk == 0:
            return tk
    # TODO(synk): for awkward D, zero-pad W1 rows / obs cols to a multiple of
    # 512 instead of falling back to one (possibly VMEM-busting) K block.
    return d


def prepare_params(params, feat_dim, act_dim):
    """One-time conversion of torch-style params into kernel-ready form."""
    F, A = feat_dim, act_dim
    L = params["w2"].shape[0] - F
    PACK = ((F + A + 127) // 128) * 128                 # lane-dense slab width

    w2f = params["w2"][:F, :]
    w2l = params["w2"][F:, :]

    # Wc = [I_F | W2_ft | 0]  -> packed = ft @ Wc gives [ft | ft@W2_ft | 0].
    wc = jnp.zeros((F, PACK), jnp.float32)
    wc = wc.at[:, :F].set(jnp.eye(F, dtype=jnp.float32))
    wc = wc.at[:, F:F + A].set(w2f)

    w2l_pad = jnp.zeros((L, PACK), jnp.float32).at[:, F:F + A].set(w2l)
    bslab = jnp.zeros((1, PACK), jnp.float32).at[:, F:F + A].set(
        params["b2"].reshape(1, -1))

    return {
        "w1_bf16": params["w1"].astype(jnp.bfloat16),
        "b1_2d": params["b1"].reshape(1, -1).astype(jnp.float32),
        "wc_bf16": wc.astype(jnp.bfloat16),
        "w2l_pad": w2l_pad,
        "bslab": bslab,
        "feat_dim": F,
        "act_dim": A,
    }


def local_model_forward(observation, locations, kparams):
    """observation: (B, C, H, W) NCHW; locations: (B, L). Returns (out, ft).

    ft in the returned pair is bf16-precision (it passes through the MXU's
    identity columns of the packed classifier weight)."""
    B = observation.shape[0]
    obs_flat = observation.reshape(B, -1).astype(jnp.float32)   # NO bf16 here
    loc = locations.astype(jnp.float32)

    w1 = kparams["w1_bf16"]
    b1 = kparams["b1_2d"]
    wc = kparams["wc_bf16"]
    w2l = kparams["w2l_pad"]
    bslab = kparams["bslab"]

    D, F = w1.shape
    L = loc.shape[1]
    A = kparams["act_dim"]
    PACK = wc.shape[1]

    # Batch tiling (divisor-friendly -> usually no wrapper-side jnp.pad).
    TB = _choose_tb(B)
    pad_b = (-B) % TB
    if pad_b:
        obs_flat = jnp.pad(obs_flat, ((0, pad_b), (0, 0)))
        loc = jnp.pad(loc, ((0, pad_b), (0, 0)))
    Bp = B + pad_b
    nb = Bp // TB

    # K (reduction) tiling over the flattened observation dim.
    TK = _choose_tk(D)
    nk = D // TK

    packed = pl.pallas_call(
        local_model_kernel,
        out_shape=jax.ShapeDtypeStruct((Bp, PACK), jnp.float32),
        grid=(nb, nk),
        in_specs=[
            pl.BlockSpec((TB, TK), lambda i, k: (i, k)),    # obs tile (f32)
            pl.BlockSpec((TK, F), lambda i, k: (k, 0)),     # W1 K-tile (bf16)
            pl.BlockSpec((1, F), lambda i, k: (0, 0)),      # b1
            pl.BlockSpec((TB, L), lambda i, k: (i, 0)),     # locations tile
            pl.BlockSpec((F, PACK), lambda i, k: (0, 0)),   # [I_F | W2f | 0]
            pl.BlockSpec((L, PACK), lambda i, k: (0, 0)),   # padded W2_loc
            pl.BlockSpec((1, PACK), lambda i, k: (0, 0)),   # [0 | b2 | 0]
        ],
        out_specs=pl.BlockSpec((TB, PACK), lambda i, k: (i, 0)),
        scratch_shapes=[pltpu.VMEM((TB, F), jnp.float32)],  # f32 accumulator
        compiler_params=pltpu.CompilerParams(
            dimension_semantics=("parallel", "arbitrary")),
    )(obs_flat, w1, b1, loc, wc, w2l, bslab)

    ft = packed[:B, :F]
    out = packed[:B, F:F + A]
    return out, ft


def init_params(key, c, h, w, loc_dim, feat_dim, act_dim):
    d_in = c * h * w
    k1, k2, k3, k4 = jax.random.split(key, 4)
    scale1 = 1.0 / jnp.sqrt(d_in)
    scale2 = 1.0 / jnp.sqrt(feat_dim + loc_dim)
    return {
        "w1": jax.random.normal(k1, (d_in, feat_dim), jnp.float32) * scale1,
        "b1": jax.random.normal(k2, (feat_dim,), jnp.float32) * scale1,
        "w2": jax.random.normal(k3, (feat_dim + loc_dim, act_dim),
                                jnp.float32) * scale2,
        "b2": jax.random.normal(k4, (act_dim,), jnp.float32) * scale2,
    }


if __name__ == "__main__":
    # Small shapes consistent with the module's forward contract.
    B, C, H, W = 2, 4, 16, 16
    LOC_DIM, FEAT_DIM, ACT_DIM = 2, 32, 2

    key = jax.random.PRNGKey(0)
    k_obs, k_loc, k_par = jax.random.split(key, 3)
    observation = jax.random.normal(k_obs, (B, C, H, W), jnp.float32)
    locations = jax.random.normal(k_loc, (B, LOC_DIM), jnp.float32)
    params = init_params(k_par, C, H, W, LOC_DIM, FEAT_DIM, ACT_DIM)
    kparams = prepare_params(params, FEAT_DIM, ACT_DIM)

    out, ft = local_model_forward(observation, locations, kparams)
    jax.block_until_ready((out, ft))

    # Reference in plain JAX mirroring the kernel numerics
    # (bf16 matmul operands, f32 accumulation; ft is bf16-precision).
    obs_flat = observation.reshape(B, -1)
    obs_b = obs_flat.astype(jnp.bfloat16).astype(jnp.float32)
    w1_b = params["w1"].astype(jnp.bfloat16).astype(jnp.float32)
    ft_ref = jnp.maximum(obs_b @ w1_b + params["b1"], 0.0)
    w2f_b = params["w2"][:FEAT_DIM, :].astype(jnp.bfloat16).astype(jnp.float32)
    ft_ref_b = ft_ref.astype(jnp.bfloat16).astype(jnp.float32)
    out_ref = (ft_ref_b @ w2f_b
               + locations @ params["w2"][FEAT_DIM:, :]
               + params["b2"])

    assert out.shape == (B, ACT_DIM) and ft.shape == (B, FEAT_DIM)
    assert jnp.allclose(ft, ft_ref, atol=2e-2, rtol=2e-2)
    assert jnp.allclose(out, out_ref, atol=2e-2, rtol=2e-2)

    print("KERNEL_OK")
</pallas_src>

<mosaic_0001>
module attributes {stable_mosaic.version = 11 : i64} {
  func.func @local_model_kernel(%arg0: i32, %arg1: i32, %arg2: memref<2x1024xf32, #tpu.memory_space<vmem>>, %arg3: memref<1024x32xbf16, #tpu.memory_space<vmem>>, %arg4: memref<1x32xf32, #tpu.memory_space<vmem>>, %arg5: memref<2x2xf32, #tpu.memory_space<vmem>>, %arg6: memref<32x128xbf16, #tpu.memory_space<vmem>>, %arg7: memref<2x128xf32, #tpu.memory_space<vmem>>, %arg8: memref<1x128xf32, #tpu.memory_space<vmem>>, %arg9: memref<2x128xf32, #tpu.memory_space<vmem>>, %arg10: memref<2x32xf32, #tpu.memory_space<vmem>>) attributes {dimension_semantics = [#tpu.dimension_semantics<parallel>, #tpu.dimension_semantics<arbitrary>], iteration_bounds = array<i64: 1, 1>, scalar_prefetch = 0 : i64, scratch_operands = 1 : i64, tpu.core_type = #tpu.core_type<tc>, window_params = [{transform_indices = @transform_0, window_bounds = array<i64: 2, 1024>}, {transform_indices = @transform_1, window_bounds = array<i64: 1024, 32>}, {pipeline_mode = #tpu.pipeline_mode<synchronous>, transform_indices = @transform_2, window_bounds = array<i64: 1, 32>}, {transform_indices = @transform_3, window_bounds = array<i64: 2, 2>}, {pipeline_mode = #tpu.pipeline_mode<synchronous>, transform_indices = @transform_4, window_bounds = array<i64: 32, 128>}, {pipeline_mode = #tpu.pipeline_mode<synchronous>, transform_indices = @transform_5, window_bounds = array<i64: 2, 128>}, {pipeline_mode = #tpu.pipeline_mode<synchronous>, transform_indices = @transform_6, window_bounds = array<i64: 1, 128>}, {transform_indices = @transform_7, window_bounds = array<i64: 2, 128>}]} {
    %c0_i32 = arith.constant 0 : i32
    %0 = arith.cmpi eq, %arg1, %c0_i32 : i32
    %1 = arith.extui %0 : i1 to i32
    %c0_i32_0 = arith.constant 0 : i32
    %2 = arith.cmpi ne, %1, %c0_i32_0 : i32
    scf.if %2 {
      %cst_10 = arith.constant 0.000000e+00 : f32
      %13 = vector.broadcast %cst_10 : f32 to vector<2x32xf32>
      %c0_11 = arith.constant 0 : index
      %c0_12 = arith.constant 0 : index
      %14 = vector.load %arg10[%c0_11, %c0_12] : memref<2x32xf32, #tpu.memory_space<vmem>>, vector<2x32xf32>
      tpu.vector_store %arg10[%c0_11, %c0_12], %13 {strides = array<i32>} : memref<2x32xf32, #tpu.memory_space<vmem>>, vector<2x32xf32>,
    } else {
    }
    %c0 = arith.constant 0 : index
    %c0_1 = arith.constant 0 : index
    %3 = vector.load %arg10[%c0, %c0_1] : memref<2x32xf32, #tpu.memory_space<vmem>>, vector<2x32xf32>
    %c0_2 = arith.constant 0 : index
    %c0_3 = arith.constant 0 : index
    %4 = vector.load %arg2[%c0_2, %c0_3] : memref<2x1024xf32, #tpu.memory_space<vmem>>, vector<2x1024xf32>
    %5 = arith.truncf %4 : vector<2x1024xf32> to vector<2x1024xbf16>
    %c0_4 = arith.constant 0 : index
    %c0_5 = arith.constant 0 : index
    %6 = vector.load %arg3[%c0_4, %c0_5] : memref<1024x32xbf16, #tpu.memory_space<vmem>>, vector<1024x32xbf16>
    %cst = arith.constant dense<0.000000e+00> : vector<2x32xf32>
    %7 = tpu.matmul %5, %6, %cst {dimension_numbers = #tpu.dot_dimension_numbers<[1], [0], [0], [1], [0, 0, 1, 1], [], []>} : vector<2x1024xbf16>, vector<1024x32xbf16>, vector<2x32xf32> -> vector<2x32xf32>
    %8 = arith.addf %3, %7 : vector<2x32xf32>
    %c0_6 = arith.constant 0 : index
    %c0_7 = arith.constant 0 : index
    %9 = vector.load %arg10[%c0_6, %c0_7] : memref<2x32xf32, #tpu.memory_space<vmem>>, vector<2x32xf32>
    tpu.vector_store %arg10[%c0_6, %c0_7], %8 {strides = array<i32>} : memref<2x32xf32, #tpu.memory_space<vmem>>, vector<2x32xf32>,
    %c0_i32_8 = arith.constant 0 : i32
    %10 = arith.cmpi eq, %arg1, %c0_i32_8 : i32
    %11 = arith.extui %10 : i1 to i32
    %c0_i32_9 = arith.constant 0 : i32
    %12 = arith.cmpi ne, %11, %c0_i32_9 : i32
    scf.if %12 {
      %c0_10 = arith.constant 0 : index
      %c0_11 = arith.constant 0 : index
      %13 = vector.load %arg10[%c0_10, %c0_11] : memref<2x32xf32, #tpu.memory_space<vmem>>, vector<2x32xf32>
      %c0_12 = arith.constant 0 : index
      %c0_13 = arith.constant 0 : index
      %14 = vector.load %arg4[%c0_12, %c0_13] : memref<1x32xf32, #tpu.memory_space<vmem>>, vector<1x32xf32>
      %15 = vector.broadcast %14 : vector<1x32xf32> to vector<2x32xf32>
      %16 = arith.addf %13, %15 : vector<2x32xf32>
      %cst_14 = arith.constant 0.000000e+00 : f32
      %17 = vector.broadcast %cst_14 : f32 to vector<2x32xf32>
      %18 = arith.maximumf %16, %17 : vector<2x32xf32>
      %19 = arith.truncf %18 : vector<2x32xf32> to vector<2x32xbf16>
      %c0_15 = arith.constant 0 : index
      %c0_16 = arith.constant 0 : index
      %20 = vector.load %arg6[%c0_15, %c0_16] : memref<32x128xbf16, #tpu.memory_space<vmem>>, vector<32x128xbf16>
      %cst_17 = arith.constant dense<0.000000e+00> : vector<2x128xf32>
      %21 = tpu.matmul %19, %20, %cst_17 {dimension_numbers = #tpu.dot_dimension_numbers<[1], [0], [0], [1], [0, 0, 1, 1], [], []>} : vector<2x32xbf16>, vector<32x128xbf16>, vector<2x128xf32> -> vector<2x128xf32>
      %c0_18 = arith.constant 0 : index
      %c0_19 = arith.constant 0 : index
      %22 = vector.load %arg5[%c0_18, %c0_19] : memref<2x2xf32, #tpu.memory_space<vmem>>, vector<2x2xf32>
      %c0_20 = arith.constant 0 : index
      %c0_21 = arith.constant 0 : index
      %23 = vector.load %arg7[%c0_20, %c0_21] : memref<2x128xf32, #tpu.memory_space<vmem>>, vector<2x128xf32>
      %24 = vector.extract_strided_slice %22 {offsets = [0, 0], sizes = [2, 1], strides = [1, 1]} : vector<2x2xf32> to vector<2x1xf32>
      %25 = vector.extract_strided_slice %23 {offsets = [0, 0], sizes = [1, 128], strides = [1, 1]} : vector<2x128xf32> to vector<1x128xf32>
      %26 = vector.broadcast %24 : vector<2x1xf32> to vector<2x128xf32>
      %27 = vector.broadcast %25 : vector<1x128xf32> to vector<2x128xf32>
      %28 = arith.mulf %26, %27 : vector<2x128xf32>
      %29 = arith.addf %21, %28 : vector<2x128xf32>
      %30 = vector.extract_strided_slice %22 {offsets = [0, 1], sizes = [2, 1], strides = [1, 1]} : vector<2x2xf32> to vector<2x1xf32>
      %31 = vector.extract_strided_slice %23 {offsets = [1, 0], sizes = [1, 128], strides = [1, 1]} : vector<2x128xf32> to vector<1x128xf32>
      %32 = vector.broadcast %30 : vector<2x1xf32> to vector<2x128xf32>
      %33 = vector.broadcast %31 : vector<1x128xf32> to vector<2x128xf32>
      %34 = arith.mulf %32, %33 : vector<2x128xf32>
      %35 = arith.addf %29, %34 : vector<2x128xf32>
      %c0_22 = arith.constant 0 : index
      %c0_23 = arith.constant 0 : index
      %36 = vector.load %arg8[%c0_22, %c0_23] : memref<1x128xf32, #tpu.memory_space<vmem>>, vector<1x128xf32>
      %37 = vector.broadcast %36 : vector<1x128xf32> to vector<2x128xf32>
      %38 = arith.addf %35, %37 : vector<2x128xf32>
      %c0_24 = arith.constant 0 : index
      %c0_25 = arith.constant 0 : index
      %39 = vector.load %arg9[%c0_24, %c0_25] : memref<2x128xf32, #tpu.memory_space<vmem>>, vector<2x128xf32>
      tpu.vector_store %arg9[%c0_24, %c0_25], %38 {strides = array<i32>} : memref<2x128xf32, #tpu.memory_space<vmem>>, vector<2x128xf32>,
    } else {
    }
    return
  }
  func.func @transform_0(%arg0: i32, %arg1: i32) -> (i32, i32) {
    %c0_i32 = arith.constant 0 : i32
    return %arg0, %arg1 : i32, i32
  }
  func.func @transform_1(%arg0: i32, %arg1: i32) -> (i32, i32) {
    %c0_i32 = arith.constant 0 : i32
    %c0_i32_0 = arith.constant 0 : i32
    return %arg1, %c0_i32 : i32, i32
  }
  func.func @transform_2(%arg0: i32, %arg1: i32) -> (i32, i32) {
    %c0_i32 = arith.constant 0 : i32
    %c0_i32_0 = arith.constant 0 : i32
    %c0_i32_1 = arith.constant 0 : i32
    return %c0_i32, %c0_i32_0 : i32, i32
  }
  func.func @transform_3(%arg0: i32, %arg1: i32) -> (i32, i32) {
    %c0_i32 = arith.constant 0 : i32
    %c0_i32_0 = arith.constant 0 : i32
    return %arg0, %c0_i32 : i32, i32
  }
  func.func @transform_4(%arg0: i32, %arg1: i32) -> (i32, i32) {
    %c0_i32 = arith.constant 0 : i32
    %c0_i32_0 = arith.constant 0 : i32
    %c0_i32_1 = arith.constant 0 : i32
    return %c0_i32, %c0_i32_0 : i32, i32
  }
  func.func @transform_5(%arg0: i32, %arg1: i32) -> (i32, i32) {
    %c0_i32 = arith.constant 0 : i32
    %c0_i32_0 = arith.constant 0 : i32
    %c0_i32_1 = arith.constant 0 : i32
    return %c0_i32, %c0_i32_0 : i32, i32
  }
  func.func @transform_6(%arg0: i32, %arg1: i32) -> (i32, i32) {
    %c0_i32 = arith.constant 0 : i32
    %c0_i32_0 = arith.constant 0 : i32
    %c0_i32_1 = arith.constant 0 : i32
    return %c0_i32, %c0_i32_0 : i32, i32
  }
  func.func @transform_7(%arg0: i32, %arg1: i32) -> (i32, i32) {
    %c0_i32 = arith.constant 0 : i32
    %c0_i32_0 = arith.constant 0 : i32
    return %arg0, %c0_i32 : i32, i32
  }
}

</mosaic_0001>

<llo_original>
// kernel: tpu_custom_call.1
$region0: #{tpu_custom_call.1}
  #allocation0 [shape = 'u32[]', space=smem, size = 0x4, offset = 0x4, fixed_abs, tag = 'smem constant byte address 0x4 - core index']
  #allocation1 [shape = 'u32[144,128]{1,0:T(1,128)}', space=vmem, size = 0x12000, scoped, tag = 'internal scratch']
  #allocation2 [shape = 'f32[2,32]{1,0:T(2,128)}', space=vmem, size = 0x400, scoped, tag = 'scratch operand']
  %s0 = inlined_call_operand.vmem [shape: f32[2,1024], index: 0, kind: input, shape index: {}]
  %s1 = inlined_call_operand.vmem [shape: bf16[1024,32], index: 1, kind: input, shape index: {}]
  %s2 = inlined_call_operand.vmem [shape: f32[1,32], index: 2, kind: input, shape index: {}]
  %s3 = inlined_call_operand.vmem [shape: f32[2,2], index: 3, kind: input, shape index: {}]
  %s4 = inlined_call_operand.vmem [shape: bf16[32,128], index: 4, kind: input, shape index: {}]
  %s5 = inlined_call_operand.vmem [shape: f32[2,128], index: 5, kind: input, shape index: {}]
  %s6 = inlined_call_operand.vmem [shape: f32[1,128], index: 6, kind: input, shape index: {}]
  %s7 = inlined_call_operand.hbm [shape: f32[2,128], index: 7, kind: output, shape index: {}]
  %s8 = sld [smem:[#allocation0]]
  $region46: #{tpu_custom_call.1} parent=0
    _
  %s10 = ssub.s32 1, %s8
  %s11 = scalar_select 0, %s10, %s8
  $region1: #{tpu_custom_call.1} parent=0
    #allocation3 [shape = 'u8[1024]{0}', space=vmem, size = 0x400, scoped, tag = 'output window, operand 0, single buffered']
    #allocation4 [shape = 's32[1]{0}', space=sflag, size = 0x4, scoped, tag = 'scoped memory for tpu_custom_call.1']
    %12 = vsyncpa [#allocation4], 0
    // Predicated region
    $region2: #{tpu_custom_call.1} parent=1 // pred_check
      _
    $region3: #{tpu_custom_call.1} parent=1 // pred_check_branch
      %14 = sbr.rel (0) target = $region5
    $region4: #{tpu_custom_call.1} parent=1 // pred_region
      _
    $region5: #{tpu_custom_call.1} parent=1 // pred_fallthru
      _
    // Predicated region
    $region6: #{tpu_custom_call.1} parent=1 // pred_check
      _
    $region7: #{tpu_custom_call.1} parent=1 // pred_check_branch
      %16 = sbr.rel (0) target = $region9
    $region8: #{tpu_custom_call.1} parent=1 // pred_region
      _
    $region9: #{tpu_custom_call.1} parent=1 // pred_fallthru
      _
    // Predicated region
    $region10: #{tpu_custom_call.1} parent=1 // pred_check
      _
    $region11: #{tpu_custom_call.1} parent=1 // pred_check_branch
      %18 = sbr.rel (0) target = $region13
    $region12: #{tpu_custom_call.1} parent=1 // pred_region
      _
    $region13: #{tpu_custom_call.1} parent=1 // pred_fallthru
      _
    // Predicated region
    $region14: #{tpu_custom_call.1} parent=1 // pred_check
      _
    $region15: #{tpu_custom_call.1} parent=1 // pred_check_branch
      %20 = sbr.rel (0) target = $region17
    $region16: #{tpu_custom_call.1} parent=1 // pred_region
      _
    $region17: #{tpu_custom_call.1} parent=1 // pred_fallthru
      _
    // Predicated region
    $region18: #{tpu_custom_call.1} parent=1 // pred_check
      _
    $region19: #{tpu_custom_call.1} parent=1 // pred_check_branch
      %22 = sbr.rel (0) target = $region21
    $region20: #{tpu_custom_call.1} parent=1 // pred_region
      _
    $region21: #{tpu_custom_call.1} parent=1 // pred_fallthru
      _
    // Predicated region
    $region22: #{tpu_custom_call.1} parent=1 // pred_check
      _
    $region23: #{tpu_custom_call.1} parent=1 // pred_check_branch
      %24 = sbr.rel (0) target = $region25
    $region24: #{tpu_custom_call.1} parent=1 // pred_region
      _
    $region25: #{tpu_custom_call.1} parent=1 // pred_fallthru
      _
    // Predicated region
    $region26: #{tpu_custom_call.1} parent=1 // pred_check
      _
    $region27: #{tpu_custom_call.1} parent=1 // pred_check_branch
      %26 = sbr.rel (0) target = $region29
    $region28: #{tpu_custom_call.1} parent=1 // pred_region
      _
    $region29: #{tpu_custom_call.1} parent=1 // pred_fallthru
      _
    %p28 = scmp.eq.s32.totalorder 0, 0
    // Predicated region
    $region30: #{tpu_custom_call.1} parent=1 // pred_check
      %p29 = pneg %p28
    $region31: #{tpu_custom_call.1} parent=1 // pred_check_branch
      %31 = sbr.rel (%p29) target = $region33
    $region32: #{tpu_custom_call.1} parent=1 // pred_region
      %vm32 = vcmask 254976
      %33 = vst.msk [vmem:[#allocation2] sm:$0x3] %vm32, 0.0
    $region33: #{tpu_custom_call.1} parent=1 // pred_fallthru
      _
    %v34 = vld [vmem:[#allocation2] sm:$0x3]
    %v35 = vld [vmem:[%s0] sm:$0xff]
    %v36 = vld [vmem:[%s0 + $0x8] sm:$0xff]
    %v39 = vcombine.high %v35, %v35
    %v41 = vunpack.c.l.s4 1983009808
    %v42 = vunpack.c.0.s8 %v41
    %v43 = vlaneseq
    %v44 = vshrl.u32 %v43, 7
    %v45 = vsub.s32 %v42, %v44
    %v46 = vrot.slane %v35, %v45
    %v48 = vunpack.c.l.s4 1983009808
    %v49 = vunpack.c.0.s8 %v48
    %v50 = vlaneseq
    %v51 = vshrl.u32 %v50, 7
    %v52 = vsub.s32 %v49, %v51
    %v53 = vrot.slane %v39, %v52
    %v54 = vcombine.high %v46, %v46
    %v55 = vcombine.high %v53, %v53
    %v56 = vcombine.high %v36, %v36
    %v58 = vunpack.c.l.s4 1983009808
    %v59 = vunpack.c.0.s8 %v58
    %v60 = vlaneseq
    %v61 = vshrl.u32 %v60, 7
    %v62 = vsub.s32 %v59, %v61
    %v63 = vrot.slane %v36, %v62
    %v65 = vunpack.c.l.s4 1983009808
    %v66 = vunpack.c.0.s8 %v65
    %v67 = vlaneseq
    %v68 = vshrl.u32 %v67, 7
    %v69 = vsub.s32 %v66, %v68
    %v70 = vrot.slane %v56, %v69
    %v71 = vcombine.high %v63, %v63
    %v72 = vcombine.high %v70, %v70
    %v81 = vpack.c.bf16 %v46, %v46
    %v82 = vpack.c.bf16 %v54, %v54
    %v83 = vpack.c.bf16 %v53, %v53
    %v84 = vpack.c.bf16 %v55, %v55
    %v85 = vpack.c.bf16 %v63, %v63
    %v86 = vpack.c.bf16 %v71, %v71
    %v87 = vpack.c.bf16 %v70, %v70
    %v88 = vpack.c.bf16 %v72, %v72
    %v89 = vld [vmem:[%s1] sm:$0xf]
    %v90 = vld [vmem:[%s1 + $0x4] sm:$0xf]
    %v91 = vld [vmem:[%s1 + $0x8] sm:$0xf]
    %v92 = vld [vmem:[%s1 + $0xc] sm:$0xf]
    %v93 = vld [vmem:[%s1 + $0x10] sm:$0xf]
    %v94 = vld [vmem:[%s1 + $0x14] sm:$0xf]
    %v95 = vld [vmem:[%s1 + $0x18] sm:$0xf]
    %v96 = vld [vmem:[%s1 + $0x1c] sm:$0xf]
    %v97 = vld [vmem:[%s1 + $0x20] sm:$0xf]
    %v98 = vld [vmem:[%s1 + $0x24] sm:$0xf]
    %v99 = vld [vmem:[%s1 + $0x28] sm:$0xf]
    %v100 = vld [vmem:[%s1 + $0x2c] sm:$0xf]
    %v101 = vld [vmem:[%s1 + $0x30] sm:$0xf]
    %v102 = vld [vmem:[%s1 + $0x34] sm:$0xf]
    %v103 = vld [vmem:[%s1 + $0x38] sm:$0xf]
    %v104 = vld [vmem:[%s1 + $0x3c] sm:$0xf]
    %v105 = vld [vmem:[%s1 + $0x40] sm:$0xf]
    %v106 = vld [vmem:[%s1 + $0x44] sm:$0xf]
    %v107 = vld [vmem:[%s1 + $0x48] sm:$0xf]
    %v108 = vld [vmem:[%s1 + $0x4c] sm:$0xf]
    %v109 = vld [vmem:[%s1 + $0x50] sm:$0xf]
    %v110 = vld [vmem:[%s1 + $0x54] sm:$0xf]
    %v111 = vld [vmem:[%s1 + $0x58] sm:$0xf]
    %v112 = vld [vmem:[%s1 + $0x5c] sm:$0xf]
    %v113 = vld [vmem:[%s1 + $0x60] sm:$0xf]
    %v114 = vld [vmem:[%s1 + $0x64] sm:$0xf]
    %v115 = vld [vmem:[%s1 + $0x68] sm:$0xf]
    %v116 = vld [vmem:[%s1 + $0x6c] sm:$0xf]
    %v117 = vld [vmem:[%s1 + $0x70] sm:$0xf]
    %v118 = vld [vmem:[%s1 + $0x74] sm:$0xf]
    %v119 = vld [vmem:[%s1 + $0x78] sm:$0xf]
    %v120 = vld [vmem:[%s1 + $0x7c] sm:$0xf]
    %v121 = vld [vmem:[%s1 + $0x80] sm:$0xf]
    %v122 = vld [vmem:[%s1 + $0x84] sm:$0xf]
    %v123 = vld [vmem:[%s1 + $0x88] sm:$0xf]
    %v124 = vld [vmem:[%s1 + $0x8c] sm:$0xf]
    %v125 = vld [vmem:[%s1 + $0x90] sm:$0xf]
    %v126 = vld [vmem:[%s1 + $0x94] sm:$0xf]
    %v127 = vld [vmem:[%s1 + $0x98] sm:$0xf]
    %v128 = vld [vmem:[%s1 + $0x9c] sm:$0xf]
    %v129 = vld [vmem:[%s1 + $0xa0] sm:$0xf]
    %v130 = vld [vmem:[%s1 + $0xa4] sm:$0xf]
    %v131 = vld [vmem:[%s1 + $0xa8] sm:$0xf]
    %v132 = vld [vmem:[%s1 + $0xac] sm:$0xf]
    %v133 = vld [vmem:[%s1 + $0xb0] sm:$0xf]
    %v134 = vld [vmem:[%s1 + $0xb4] sm:$0xf]
    %v135 = vld [vmem:[%s1 + $0xb8] sm:$0xf]
    %v136 = vld [vmem:[%s1 + $0xbc] sm:$0xf]
    %v137 = vld [vmem:[%s1 + $0xc0] sm:$0xf]
    %v138 = vld [vmem:[%s1 + $0xc4] sm:$0xf]
    %v139 = vld [vmem:[%s1 + $0xc8] sm:$0xf]
    %v140 = vld [vmem:[%s1 + $0xcc] sm:$0xf]
    %v141 = vld [vmem:[%s1 + $0xd0] sm:$0xf]
    %v142 = vld [vmem:[%s1 + $0xd4] sm:$0xf]
    %v143 = vld [vmem:[%s1 + $0xd8] sm:$0xf]
    %v144 = vld [vmem:[%s1 + $0xdc] sm:$0xf]
    %v145 = vld [vmem:[%s1 + $0xe0] sm:$0xf]
    %v146 = vld [vmem:[%s1 + $0xe4] sm:$0xf]
    %v147 = vld [vmem:[%s1 + $0xe8] sm:$0xf]
    %v148 = vld [vmem:[%s1 + $0xec] sm:$0xf]
    %v149 = vld [vmem:[%s1 + $0xf0] sm:$0xf]
    %v150 = vld [vmem:[%s1 + $0xf4] sm:$0xf]
    %v151 = vld [vmem:[%s1 + $0xf8] sm:$0xf]
    %v152 = vld [vmem:[%s1 + $0xfc] sm:$0xf]
    %v153 = vld [vmem:[%s1 + $0x100] sm:$0xf]
    %v154 = vld [vmem:[%s1 + $0x104] sm:$0xf]
    %v155 = vld [vmem:[%s1 + $0x108] sm:$0xf]
    %v156 = vld [vmem:[%s1 + $0x10c] sm:$0xf]
    %v157 = vld [vmem:[%s1 + $0x110] sm:$0xf]
    %v158 = vld [vmem:[%s1 + $0x114] sm:$0xf]
    %v159 = vld [vmem:[%s1 + $0x118] sm:$0xf]
    %v160 = vld [vmem:[%s1 + $0x11c] sm:$0xf]
    %v161 = vld [vmem:[%s1 + $0x120] sm:$0xf]
    %v162 = vld [vmem:[%s1 + $0x124] sm:$0xf]
    %v163 = vld [vmem:[%s1 + $0x128] sm:$0xf]
    %v164 = vld [vmem:[%s1 + $0x12c] sm:$0xf]
    %v165 = vld [vmem:[%s1 + $0x130] sm:$0xf]
    %v166 = vld [vmem:[%s1 + $0x134] sm:$0xf]
    %v167 = vld [vmem:[%s1 + $0x138] sm:$0xf]
    %v168 = vld [vmem:[%s1 + $0x13c] sm:$0xf]
    %v169 = vld [vmem:[%s1 + $0x140] sm:$0xf]
    %v170 = vld [vmem:[%s1 + $0x144] sm:$0xf]
    %v171 = vld [vmem:[%s1 + $0x148] sm:$0xf]
    %v172 = vld [vmem:[%s1 + $0x14c] sm:$0xf]
    %v173 = vld [vmem:[%s1 + $0x150] sm:$0xf]
    %v174 = vld [vmem:[%s1 + $0x154] sm:$0xf]
    %v175 = vld [vmem:[%s1 + $0x158] sm:$0xf]
    %v176 = vld [vmem:[%s1 + $0x15c] sm:$0xf]
    %v177 = vld [vmem:[%s1 + $0x160] sm:$0xf]
    %v178 = vld [vmem:[%s1 + $0x164] sm:$0xf]
    %v179 = vld [vmem:[%s1 + $0x168] sm:$0xf]
    %v180 = vld [vmem:[%s1 + $0x16c] sm:$0xf]
    %v181 = vld [vmem:[%s1 + $0x170] sm:$0xf]
    %v182 = vld [vmem:[%s1 + $0x174] sm:$0xf]
    %v183 = vld [vmem:[%s1 + $0x178] sm:$0xf]
    %v184 = vld [vmem:[%s1 + $0x17c] sm:$0xf]
    %v185 = vld [vmem:[%s1 + $0x180] sm:$0xf]
    %v186 = vld [vmem:[%s1 + $0x184] sm:$0xf]
    %v187 = vld [vmem:[%s1 + $0x188] sm:$0xf]
    %v188 = vld [vmem:[%s1 + $0x18c] sm:$0xf]
    %v189 = vld [vmem:[%s1 + $0x190] sm:$0xf]
    %v190 = vld [vmem:[%s1 + $0x194] sm:$0xf]
    %v191 = vld [vmem:[%s1 + $0x198] sm:$0xf]
    %v192 = vld [vmem:[%s1 + $0x19c] sm:$0xf]
    %v193 = vld [vmem:[%s1 + $0x1a0] sm:$0xf]
    %v194 = vld [vmem:[%s1 + $0x1a4] sm:$0xf]
    %v195 = vld [vmem:[%s1 + $0x1a8] sm:$0xf]
    %v196 = vld [vmem:[%s1 + $0x1ac] sm:$0xf]
    %v197 = vld [vmem:[%s1 + $0x1b0] sm:$0xf]
    %v198 = vld [vmem:[%s1 + $0x1b4] sm:$0xf]
    %v199 = vld [vmem:[%s1 + $0x1b8] sm:$0xf]
    %v200 = vld [vmem:[%s1 + $0x1bc] sm:$0xf]
    %v201 = vld [vmem:[%s1 + $0x1c0] sm:$0xf]
    %v202 = vld [vmem:[%s1 + $0x1c4] sm:$0xf]
    %v203 = vld [vmem:[%s1 + $0x1c8] sm:$0xf]
    %v204 = vld [vmem:[%s1 + $0x1cc] sm:$0xf]
    %v205 = vld [vmem:[%s1 + $0x1d0] sm:$0xf]
    %v206 = vld [vmem:[%s1 + $0x1d4] sm:$0xf]
    %v207 = vld [vmem:[%s1 + $0x1d8] sm:$0xf]
    %v208 = vld [vmem:[%s1 + $0x1dc] sm:$0xf]
    %v209 = vld [vmem:[%s1 + $0x1e0] sm:$0xf]
    %v210 = vld [vmem:[%s1 + $0x1e4] sm:$0xf]
    %v211 = vld [vmem:[%s1 + $0x1e8] sm:$0xf]
    %v212 = vld [vmem:[%s1 + $0x1ec] sm:$0xf]
    %v213 = vld [vmem:[%s1 + $0x1f0] sm:$0xf]
    %v214 = vld [vmem:[%s1 + $0x1f4] sm:$0xf]
    %v215 = vld [vmem:[%s1 + $0x1f8] sm:$0xf]
    %v216 = vld [vmem:[%s1 + $0x1fc] sm:$0xf]
    %v345 = vunpack.c.l.b16 %v89
    %v346 = vunpack.c.l.b16 %v90
    %v347 = vunpack.c.l.b16 %v91
    %v348 = vunpack.c.l.b16 %v92
    %v349 = vunpack.c.l.b16 %v93
    %v350 = vunpack.c.l.b16 %v94
    %v351 = vunpack.c.l.b16 %v95
    %v352 = vunpack.c.l.b16 %v96
    %v353 = vunpack.c.l.b16 %v97
    %v354 = vunpack.c.l.b16 %v98
    %v355 = vunpack.c.l.b16 %v99
    %v356 = vunpack.c.l.b16 %v100
    %v357 = vunpack.c.l.b16 %v101
    %v358 = vunpack.c.l.b16 %v102
    %v359 = vunpack.c.l.b16 %v103
    %v360 = vunpack.c.l.b16 %v104
    %v361 = vunpack.c.l.b16 %v105
    %v362 = vunpack.c.l.b16 %v106
    %v363 = vunpack.c.l.b16 %v107
    %v364 = vunpack.c.l.b16 %v108
    %v365 = vunpack.c.l.b16 %v109
    %v366 = vunpack.c.l.b16 %v110
    %v367 = vunpack.c.l.b16 %v111
    %v368 = vunpack.c.l.b16 %v112
    %v369 = vunpack.c.l.b16 %v113
    %v370 = vunpack.c.l.b16 %v114
    %v371 = vunpack.c.l.b16 %v115
    %v372 = vunpack.c.l.b16 %v116
    %v373 = vunpack.c.l.b16 %v117
    %v374 = vunpack.c.l.b16 %v118
    %v375 = vunpack.c.l.b16 %v119
    %v376 = vunpack.c.l.b16 %v120
    %v377 = vunpack.c.l.b16 %v121
    %v378 = vunpack.c.l.b16 %v122
    %v379 = vunpack.c.l.b16 %v123
    %v380 = vunpack.c.l.b16 %v124
    %v381 = vunpack.c.l.b16 %v125
    %v382 = vunpack.c.l.b16 %v126
    %v383 = vunpack.c.l.b16 %v127
    %v384 = vunpack.c.l.b16 %v128
    %v385 = vunpack.c.l.b16 %v129
    %v386 = vunpack.c.l.b16 %v130
    %v387 = vunpack.c.l.b16 %v131
    %v388 = vunpack.c.l.b16 %v132
    %v389 = vunpack.c.l.b16 %v133
    %v390 = vunpack.c.l.b16 %v134
    %v391 = vunpack.c.l.b16 %v135
    %v392 = vunpack.c.l.b16 %v136
    %v393 = vunpack.c.l.b16 %v137
    %v394 = vunpack.c.l.b16 %v138
    %v395 = vunpack.c.l.b16 %v139
    %v396 = vunpack.c.l.b16 %v140
    %v397 = vunpack.c.l.b16 %v141
    %v398 = vunpack.c.l.b16 %v142
    %v399 = vunpack.c.l.b16 %v143
    %v400 = vunpack.c.l.b16 %v144
    %v401 = vunpack.c.l.b16 %v145
    %v402 = vunpack.c.l.b16 %v146
    %v403 = vunpack.c.l.b16 %v147
    %v404 = vunpack.c.l.b16 %v148
    %v405 = vunpack.c.l.b16 %v149
    %v406 = vunpack.c.l.b16 %v150
    %v407 = vunpack.c.l.b16 %v151
    %v408 = vunpack.c.l.b16 %v152
    %v409 = vunpack.c.l.b16 %v153
    %v410 = vunpack.c.l.b16 %v154
    %v411 = vunpack.c.l.b16 %v155
    %v412 = vunpack.c.l.b16 %v156
    %v413 = vunpack.c.l.b16 %v157
    %v414 = vunpack.c.l.b16 %v158
    %v415 = vunpack.c.l.b16 %v159
    %v416 = vunpack.c.l.b16 %v160
    %v417 = vunpack.c.l.b16 %v161
    %v418 = vunpack.c.l.b16 %v162
    %v419 = vunpack.c.l.b16 %v163
    %v420 = vunpack.c.l.b16 %v164
    %v421 = vunpack.c.l.b16 %v165
    %v422 = vunpack.c.l.b16 %v166
    %v423 = vunpack.c.l.b16 %v167
    %v424 = vunpack.c.l.b16 %v168
    %v425 = vunpack.c.l.b16 %v169
    %v426 = vunpack.c.l.b16 %v170
    %v427 = vunpack.c.l.b16 %v171
    %v428 = vunpack.c.l.b16 %v172
    %v429 = vunpack.c.l.b16 %v173
    %v430 = vunpack.c.l.b16 %v174
    %v431 = vunpack.c.l.b16 %v175
    %v432 = vunpack.c.l.b16 %v176
    %v433 = vunpack.c.l.b16 %v177
    %v434 = vunpack.c.l.b16 %v178
    %v435 = vunpack.c.l.b16 %v179
    %v436 = vunpack.c.l.b16 %v180
    %v437 = vunpack.c.l.b16 %v181
    %v438 = vunpack.c.l.b16 %v182
    %v439 = vunpack.c.l.b16 %v183
    %v440 = vunpack.c.l.b16 %v184
    %v441 = vunpack.c.l.b16 %v185
    %v442 = vunpack.c.l.b16 %v186
    %v443 = vunpack.c.l.b16 %v187
    %v444 = vunpack.c.l.b16 %v188
    %v445 = vunpack.c.l.b16 %v189
    %v446 = vunpack.c.l.b16 %v190
    %v447 = vunpack.c.l.b16 %v191
    %v448 = vunpack.c.l.b16 %v192
    %v449 = vunpack.c.l.b16 %v193
    %v450 = vunpack.c.l.b16 %v194
    %v451 = vunpack.c.l.b16 %v195
    %v452 = vunpack.c.l.b16 %v196
    %v453 = vunpack.c.l.b16 %v197
    %v454 = vunpack.c.l.b16 %v198
    %v455 = vunpack.c.l.b16 %v199
    %v456 = vunpack.c.l.b16 %v200
    %v457 = vunpack.c.l.b16 %v201
    %v458 = vunpack.c.l.b16 %v202
    %v459 = vunpack.c.l.b16 %v203
    %v460 = vunpack.c.l.b16 %v204
    %v461 = vunpack.c.l.b16 %v205
    %v462 = vunpack.c.l.b16 %v206
    %v463 = vunpack.c.l.b16 %v207
    %v464 = vunpack.c.l.b16 %v208
    %v465 = vunpack.c.l.b16 %v209
    %v466 = vunpack.c.l.b16 %v210
    %v467 = vunpack.c.l.b16 %v211
    %v468 = vunpack.c.l.b16 %v212
    %v469 = vunpack.c.l.b16 %v213
    %v470 = vunpack.c.l.b16 %v214
    %v471 = vunpack.c.l.b16 %v215
    %v472 = vunpack.c.l.b16 %v216
    %v473 = vpack.c.b16 %v346, %v345
    %v474 = vpack.c.b16 %v348, %v347
    %v475 = vpack.c.b16 %v350, %v349
    %v476 = vpack.c.b16 %v352, %v351
    %v477 = vpack.c.b16 %v354, %v353
    %v478 = vpack.c.b16 %v356, %v355
    %v479 = vpack.c.b16 %v358, %v357
    %v480 = vpack.c.b16 %v360, %v359
    %v481 = vpack.c.b16 %v362, %v361
    %v482 = vpack.c.b16 %v364, %v363
    %v483 = vpack.c.b16 %v366, %v365
    %v484 = vpack.c.b16 %v368, %v367
    %v485 = vpack.c.b16 %v370, %v369
    %v486 = vpack.c.b16 %v372, %v371
    %v487 = vpack.c.b16 %v374, %v373
    %v488 = vpack.c.b16 %v376, %v375
    %v489 = vpack.c.b16 %v378, %v377
    %v490 = vpack.c.b16 %v380, %v379
    %v491 = vpack.c.b16 %v382, %v381
    %v492 = vpack.c.b16 %v384, %v383
    %v493 = vpack.c.b16 %v386, %v385
    %v494 = vpack.c.b16 %v388, %v387
    %v495 = vpack.c.b16 %v390, %v389
    %v496 = vpack.c.b16 %v392, %v391
    %v497 = vpack.c.b16 %v394, %v393
    %v498 = vpack.c.b16 %v396, %v395
    %v499 = vpack.c.b16 %v398, %v397
    %v500 = vpack.c.b16 %v400, %v399
    %v501 = vpack.c.b16 %v402, %v401
    %v502 = vpack.c.b16 %v404, %v403
    %v503 = vpack.c.b16 %v406, %v405
    %v504 = vpack.c.b16 %v408, %v407
    %v505 = vpack.c.b16 %v410, %v409
    %v506 = vpack.c.b16 %v412, %v411
    %v507 = vpack.c.b16 %v414, %v413
    %v508 = vpack.c.b16 %v416, %v415
    %v509 = vpack.c.b16 %v418, %v417
    %v510 = vpack.c.b16 %v420, %v419
    %v511 = vpack.c.b16 %v422, %v421
    %v512 = vpack.c.b16 %v424, %v423
    %v513 = vpack.c.b16 %v426, %v425
    %v514 = vpack.c.b16 %v428, %v427
    %v515 = vpack.c.b16 %v430, %v429
    %v516 = vpack.c.b16 %v432, %v431
    %v517 = vpack.c.b16 %v434, %v433
    %v518 = vpack.c.b16 %v436, %v435
    %v519 = vpack.c.b16 %v438, %v437
    %v520 = vpack.c.b16 %v440, %v439
    %v521 = vpack.c.b16 %v442, %v441
    %v522 = vpack.c.b16 %v444, %v443
    %v523 = vpack.c.b16 %v446, %v445
    %v524 = vpack.c.b16 %v448, %v447
    %v525 = vpack.c.b16 %v450, %v449
    %v526 = vpack.c.b16 %v452, %v451
    %v527 = vpack.c.b16 %v454, %v453
    %v528 = vpack.c.b16 %v456, %v455
    %v529 = vpack.c.b16 %v458, %v457
    %v530 = vpack.c.b16 %v460, %v459
    %v531 = vpack.c.b16 %v462, %v461
    %v532 = vpack.c.b16 %v464, %v463
    %v533 = vpack.c.b16 %v466, %v465
    %v534 = vpack.c.b16 %v468, %v467
    %v535 = vpack.c.b16 %v470, %v469
    %v536 = vpack.c.b16 %v472, %v471
    %601 = vmatprep.subr.bf16.mxu0 0
    %602 = vmatpush1.bf16.msra.mxu0 %v473
    %603 = vmatprep.subr.bf16.mxu0 0
    %604 = vmatpush1.bf16.msra.mxu0 %v474
    %605 = vmatprep.subr.bf16.mxu0 0
    %606 = vmatpush1.bf16.msra.mxu0 %v475
    %607 = vmatprep.subr.bf16.mxu0 0
    %608 = vmatpush1.bf16.msra.mxu0 %v476
    %609 = vmatprep.subr.bf16.mxu0 0
    %610 = vmatpush1.bf16.msra.mxu0 %v477
    %611 = vmatprep.subr.bf16.mxu0 0
    %612 = vmatpush1.bf16.msra.mxu0 %v478
    %613 = vmatprep.subr.bf16.mxu0 0
    %614 = vmatpush1.bf16.msra.mxu0 %v479
    %615 = vmatprep.subr.bf16.mxu0 0
    %616 = vmatpush1.bf16.msra.mxu0 %v480
    %617 = vmatprep.subr.bf16.mxu0 0
    %618 = vmatpush1.bf16.msra.mxu0 %v481
    %619 = vmatprep.subr.bf16.mxu0 0
    %620 = vmatpush1.bf16.msra.mxu0 %v482
    %621 = vmatprep.subr.bf16.mxu0 0
    %622 = vmatpush1.bf16.msra.mxu0 %v483
    %623 = vmatprep.subr.bf16.mxu0 0
    %624 = vmatpush1.bf16.msra.mxu0 %v484
    %625 = vmatprep.subr.bf16.mxu0 0
    %626 = vmatpush1.bf16.msra.mxu0 %v485
    %627 = vmatprep.subr.bf16.mxu0 0
    %628 = vmatpush1.bf16.msra.mxu0 %v486
    %629 = vmatprep.subr.bf16.mxu0 0
    %630 = vmatpush1.bf16.msra.mxu0 %v487
    %631 = vmatprep.subr.bf16.mxu0 0
    %632 = vmatpush1.bf16.msra.mxu0 %v488
    %633 = vmatprep.mubr.bf16.mxu0 %v82
    %634 = vmatmul.mubr.bf16.gmra.mrb[0].mxu0 %v81
    %v635 = vpop.f32.mrb[0].mxu0
    %v636 = vadd.f32 0.0, %v635
    %v637 = vpop.f32.mrb[0].mxu0
    %v638 = vpop.f32.mrb[0].mxu0
    %v639 = vpop.f32.mrb[0].mxu0
    %640 = vdwg.mxu0
    %641 = vmatprep.subr.bf16.mxu0 0
    %642 = vmatpush1.bf16.msra.mxu0 %v489
    %643 = vmatprep.subr.bf16.mxu0 0
    %644 = vmatpush1.bf16.msra.mxu0 %v490
    %645 = vmatprep.subr.bf16.mxu0 0
    %646 = vmatpush1.bf16.msra.mxu0 %v491
    %647 = vmatprep.subr.bf16.mxu0 0
    %648 = vmatpush1.bf16.msra.mxu0 %v492
    %649 = vmatprep.subr.bf16.mxu0 0
    %650 = vmatpush1.bf16.msra.mxu0 %v493
    %651 = vmatprep.subr.bf16.mxu0 0
    %652 = vmatpush1.bf16.msra.mxu0 %v494
    %653 = vmatprep.subr.bf16.mxu0 0
    %654 = vmatpush1.bf16.msra.mxu0 %v495
    %655 = vmatprep.subr.bf16.mxu0 0
    %656 = vmatpush1.bf16.msra.mxu0 %v496
    %657 = vmatprep.subr.bf16.mxu0 0
    %658 = vmatpush1.bf16.msra.mxu0 %v497
    %659 = vmatprep.subr.bf16.mxu0 0
    %660 = vmatpush1.bf16.msra.mxu0 %v498
    %661 = vmatprep.subr.bf16.mxu0 0
    %662 = vmatpush1.bf16.msra.mxu0 %v499
    %663 = vmatprep.subr.bf16.mxu0 0
    %664 = vmatpush1.bf16.msra.mxu0 %v500
    %665 = vmatprep.subr.bf16.mxu0 0
    %666 = vmatpush1.bf16.msra.mxu0 %v501
    %667 = vmatprep.subr.bf16.mxu0 0
    %668 = vmatpush1.bf16.msra.mxu0 %v502
    %669 = vmatprep.subr.bf16.mxu0 0
    %670 = vmatpush1.bf16.msra.mxu0 %v503
    %671 = vmatprep.subr.bf16.mxu0 0
    %672 = vmatpush1.bf16.msra.mxu0 %v504
    %673 = vmatprep.mubr.bf16.mxu0 %v84
    %674 = vmatmul.mubr.bf16.gmra.mrb[0].mxu0 %v83
    %v675 = vpop.f32.mrb[0].mxu0
    %v676 = vadd.f32 %v636, %v675
    %v677 = vpop.f32.mrb[0].mxu0
    %v678 = vpop.f32.mrb[0].mxu0
    %v679 = vpop.f32.mrb[0].mxu0
    %680 = vdwg.mxu0
    %681 = vmatprep.subr.bf16.mxu0 0
    %682 = vmatpush1.bf16.msra.mxu0 %v505
    %683 = vmatprep.subr.bf16.mxu0 0
    %684 = vmatpush1.bf16.msra.mxu0 %v506
    %685 = vmatprep.subr.bf16.mxu0 0
    %686 = vmatpush1.bf16.msra.mxu0 %v507
    %687 = vmatprep.subr.bf16.mxu0 0
    %688 = vmatpush1.bf16.msra.mxu0 %v508
    %689 = vmatprep.subr.bf16.mxu0 0
    %690 = vmatpush1.bf16.msra.mxu0 %v509
    %691 = vmatprep.subr.bf16.mxu0 0
    %692 = vmatpush1.bf16.msra.mxu0 %v510
    %693 = vmatprep.subr.bf16.mxu0 0
    %694 = vmatpush1.bf16.msra.mxu0 %v511
    %695 = vmatprep.subr.bf16.mxu0 0
    %696 = vmatpush1.bf16.msra.mxu0 %v512
    %697 = vmatprep.subr.bf16.mxu0 0
    %698 = vmatpush1.bf16.msra.mxu0 %v513
    %699 = vmatprep.subr.bf16.mxu0 0
    %700 = vmatpush1.bf16.msra.mxu0 %v514
    %701 = vmatprep.subr.bf16.mxu0 0
    %702 = vmatpush1.bf16.msra.mxu0 %v515
    %703 = vmatprep.subr.bf16.mxu0 0
    %704 = vmatpush1.bf16.msra.mxu0 %v516
    %705 = vmatprep.subr.bf16.mxu0 0
    %706 = vmatpush1.bf16.msra.mxu0 %v517
    %707 = vmatprep.subr.bf16.mxu0 0
    %708 = vmatpush1.bf16.msra.mxu0 %v518
    %709 = vmatprep.subr.bf16.mxu0 0
    %710 = vmatpush1.bf16.msra.mxu0 %v519
    %711 = vmatprep.subr.bf16.mxu0 0
    %712 = vmatpush1.bf16.msra.mxu0 %v520
    %713 = vmatprep.mubr.bf16.mxu0 %v86
    %714 = vmatmul.mubr.bf16.gmra.mrb[0].mxu0 %v85
    %v715 = vpop.f32.mrb[0].mxu0
    %v716 = vadd.f32 %v676, %v715
    %v717 = vpop.f32.mrb[0].mxu0
    %v718 = vpop.f32.mrb[0].mxu0
    %v719 = vpop.f32.mrb[0].mxu0
    %720 = vdwg.mxu0
    %721 = vmatprep.subr.bf16.mxu0 0
    %722 = vmatpush1.bf16.msra.mxu0 %v521
    %723 = vmatprep.subr.bf16.mxu0 0
    %724 = vmatpush1.bf16.msra.mxu0 %v522
    %725 = vmatprep.subr.bf16.mxu0 0
    %726 = vmatpush1.bf16.msra.mxu0 %v523
    %727 = vmatprep.subr.bf16.mxu0 0
    %728 = vmatpush1.bf16.msra.mxu0 %v524
    %729 = vmatprep.subr.bf16.mxu0 0
    %730 = vmatpush1.bf16.msra.mxu0 %v525
    %731 = vmatprep.subr.bf16.mxu0 0
    %732 = vmatpush1.bf16.msra.mxu0 %v526
    %733 = vmatprep.subr.bf16.mxu0 0
    %734 = vmatpush1.bf16.msra.mxu0 %v527
    %735 = vmatprep.subr.bf16.mxu0 0
    %736 = vmatpush1.bf16.msra.mxu0 %v528
    %737 = vmatprep.subr.bf16.mxu0 0
    %738 = vmatpush1.bf16.msra.mxu0 %v529
    %739 = vmatprep.subr.bf16.mxu0 0
    %740 = vmatpush1.bf16.msra.mxu0 %v530
    %741 = vmatprep.subr.bf16.mxu0 0
    %742 = vmatpush1.bf16.msra.mxu0 %v531
    %743 = vmatprep.subr.bf16.mxu0 0
    %744 = vmatpush1.bf16.msra.mxu0 %v532
    %745 = vmatprep.subr.bf16.mxu0 0
    %746 = vmatpush1.bf16.msra.mxu0 %v533
    %747 = vmatprep.subr.bf16.mxu0 0
    %748 = vmatpush1.bf16.msra.mxu0 %v534
    %749 = vmatprep.subr.bf16.mxu0 0
    %750 = vmatpush1.bf16.msra.mxu0 %v535
    %751 = vmatprep.subr.bf16.mxu0 0
    %752 = vmatpush1.bf16.msra.mxu0 %v536
    %753 = vmatprep.mubr.bf16.mxu0 %v88
    %754 = vmatmul.mubr.bf16.gmra.mrb[0].mxu0 %v87
    %v755 = vpop.f32.mrb[0].mxu0
    %v756 = vadd.f32 %v716, %v755
    %v757 = vpop.f32.mrb[0].mxu0
    %v758 = vpop.f32.mrb[0].mxu0
    %v759 = vpop.f32.mrb[0].mxu0
    %760 = vdwg.mxu0
    %v761 = vadd.f32 %v34, %v756
    %vm762 = vcmask 254976
    %763 = vst.msk [vmem:[#allocation2] sm:$0x3] %vm762, %v761
    // Predicated region
    $region34: #{tpu_custom_call.1} parent=1 // pred_check
      %p764 = pneg %p28
    $region35: #{tpu_custom_call.1} parent=1 // pred_check_branch
      %766 = sbr.rel (%p764) target = $region37
    $region36: #{tpu_custom_call.1} parent=1 // pred_region
      %v767 = vld [vmem:[#allocation2] sm:$0x3]
      %v768 = vld [vmem:[%s2] sm:$0x1]
      %v770 = vlaneseq
      %v771 = vshrl.u32 %v770, 7
      %v772 = vsub.s32 0, %v771
      %v773 = vrot.slane %v768, %v772
      %v775 = vadd.f32 %v767, %v773
      %v776 = vmax.f32 %v775, 0.0
      %v777 = vpack.c.bf16 %v776, %v776
      %v778 = vld [vmem:[%s4] sm:$0xf]
      %v779 = vld [vmem:[%s4 + $0x4] sm:$0xf]
      %v780 = vld [vmem:[%s4 + $0x8] sm:$0xf]
      %v781 = vld [vmem:[%s4 + $0xc] sm:$0xf]
      %v782 = vld [vmem:[%s3] sm:$0x3]
      %v783 = vld [vmem:[%s5] sm:$0x3]
      %785 = vset.pattern.permute.xlu0 0
      %786 = vperm.xlu0 %785, %v782
      %v787 = vpop.permute.xlu0 %786
      %v789 = vlaneseq
      %v790 = vshrl.u32 %v789, 7
      %v791 = vsub.s32 0, %v790
      %v792 = vrot.slane %v783, %v791
      %v793 = vmul.f32 %v787, %v792
      %v798 = vunpack.c.l.b16 %v778
      %v799 = vunpack.c.l.b16 %v779
      %v800 = vunpack.c.l.b16 %v780
      %v801 = vunpack.c.l.b16 %v781
      %v802 = vpack.c.b16 %v799, %v798
      %v803 = vpack.c.b16 %v801, %v800
      %vm806 = vcmask 261120
      %v808 = vsel %vm806, %v777, 0
      %810 = vmatprep.subr.bf16.mxu0 0
      %811 = vmatpush1.bf16.msra.mxu0 %v802
      %812 = vmatprep.subr.bf16.mxu0 0
      %813 = vmatpush1.bf16.msra.mxu0 %v803
      %814 = vmatprep.subr.bf16.mxu0 0
      %815 = vmatpush1.bf16.msra.mxu0 0
      %816 = vmatprep.subr.bf16.mxu0 0
      %817 = vmatpush1.bf16.msra.mxu0 0
      %818 = vmatprep.subr.bf16.mxu0 0
      %819 = vmatpush1.bf16.msra.mxu0 0
      %820 = vmatprep.subr.bf16.mxu0 0
      %821 = vmatpush1.bf16.msra.mxu0 0
      %822 = vmatprep.subr.bf16.mxu0 0
      %823 = vmatpush1.bf16.msra.mxu0 0
      %824 = vmatprep.subr.bf16.mxu0 0
      %825 = vmatpush1.bf16.msra.mxu0 0
      %826 = vmatprep.subr.bf16.mxu0 0
      %827 = vmatpush1.bf16.msra.mxu0 0
      %828 = vmatprep.subr.bf16.mxu0 0
      %829 = vmatpush1.bf16.msra.mxu0 0
      %830 = vmatprep.subr.bf16.mxu0 0
      %831 = vmatpush1.bf16.msra.mxu0 0
      %832 = vmatprep.subr.bf16.mxu0 0
      %833 = vmatpush1.bf16.msra.mxu0 0
      %834 = vmatprep.subr.bf16.mxu0 0
      %835 = vmatpush1.bf16.msra.mxu0 0
      %836 = vmatprep.subr.bf16.mxu0 0
      %837 = vmatpush1.bf16.msra.mxu0 0
      %838 = vmatprep.subr.bf16.mxu0 0
      %839 = vmatpush1.bf16.msra.mxu0 0
      %840 = vmatprep.subr.bf16.mxu0 0
      %841 = vmatpush1.bf16.msra.mxu0 0
      %842 = vmatprep.mubr.bf16.mxu0 0
      %843 = vmatmul.mubr.bf16.gmra.mrb[0].mxu0 %v808
      %v844 = vpop.f32.mrb[0].mxu0
      %v845 = vadd.f32 %v793, %v844
      %v846 = vpop.f32.mrb[0].mxu0
      %v847 = vpop.f32.mrb[0].mxu0
      %v848 = vpop.f32.mrb[0].mxu0
      %849 = vdwg.mxu0
      %850 = vset.pattern.permute.xlu0 1
      %851 = vperm.xlu0 %850, %v782
      %v852 = vpop.permute.xlu0 %851
      %v854 = vlaneseq
      %v855 = vshrl.u32 %v854, 7
      %v856 = vsub.s32 1, %v855
      %v857 = vrot.slane %v783, %v856
      %v858 = vmul.f32 %v852, %v857
      %v859 = vadd.f32 %v845, %v858
      %v860 = vld [vmem:[%s6] sm:$0x1]
      %v862 = vlaneseq
      %v863 = vshrl.u32 %v862, 7
      %v864 = vsub.s32 0, %v863
      %v865 = vrot.slane %v860, %v864
      %v867 = vadd.f32 %v859, %v865
      %868 = vst [vmem:[#allocation3] sm:$0x3] %v867
    $region37: #{tpu_custom_call.1} parent=1 // pred_fallthru
      _
    // Predicated region
    $region38: #{tpu_custom_call.1} parent=1 // pred_check
      _
    $region39: #{tpu_custom_call.1} parent=1 // pred_check_branch
      %870 = sbr.rel (0) target = $region41
    $region40: #{tpu_custom_call.1} parent=1 // pred_region
      %s872 = ssub.s32 32, 32
      %873 = vsyncadd [#allocation4], %s872
      %s875 = sshll.u32 [#allocation3], 4
      %s876 = int_to_ptr.vmem [resolvable:$true] %s875
      %878 = dma.vmem_to_hbm [thread:$0]  %s876, 32, %s7, [#allocation4]
    $region41: #{tpu_custom_call.1} parent=1 // pred_fallthru
      _
    // Predicated region
    $region42: #{tpu_custom_call.1} parent=1 // pred_check
      _
    $region43: #{tpu_custom_call.1} parent=1 // pred_check_branch
      %880 = sbr.rel (0) target = $region45
    $region44: #{tpu_custom_call.1} parent=1 // pred_region
      %881 = dma.done [#allocation4], 32
    $region45: #{tpu_custom_call.1} parent=1 // pred_fallthru
      _
    %882 = vsyncpa [#allocation4], 1

</llo_original>
